<compile_context>
chip_gen: v6e
topology: v6e:2x2x1
jax: 0.10.0
libtpu: 0.0.40
codegen_flags: <defaults>
</compile_context>

<pallas_src>
import functools

import jax
import jax.numpy as jnp
from jax.experimental import pallas as pl
from jax.experimental.pallas import tpu as pltpu

_LANE_CHOICES = (2048, 1024, 512, 256, 128)   # lane-dense last-dim candidates


def _sublane_multiple(dtype):
    # (8,128) tiles for 4-byte dtypes, (16,128) for bf16, (32,128) for int8.
    return max(8, 32 // jnp.dtype(dtype).itemsize)


def _factor_2d(n, sub):
    """(rows, lanes) with lanes a multiple of 128 dividing n and rows % sub == 0."""
    for lanes in _LANE_CHOICES:
        if n % (lanes * sub) == 0:
            return n // lanes, lanes
    return None


def _largest_divisor(total, step, cap):
    """Largest multiple of `step` that divides `total` and is <= cap."""
    best = step
    d = step
    lim = min(total, cap)
    while d <= lim:
        if total % d == 0:
            best = d
        d += step
    return best


@functools.lru_cache(maxsize=None)
def _chip_config():
    """Generation-aware VMEM budgets (fused threshold, tile size, limits)."""
    vmem_bytes = 64 * 1024 * 1024            # conservative default (v7x-like)
    try:
        vmem_bytes = int(pltpu.get_tpu_info().vmem_capacity_bytes)
    except Exception:
        pass
    kind = ""
    try:
        kind = jax.devices()[0].device_kind.lower()
    except Exception:
        pass
    has_bf16_vpu = "v5" not in kind          # v6e / v7x have bf16 VALU lanes
    if vmem_bytes >= 100 * 1024 * 1024:      # v5e / v6e: 128 MiB physical VMEM
        return dict(fused_budget=48 * 1024 * 1024,       # in + out + f32 temp
                    fused_vmem_limit=64 * 1024 * 1024,
                    target_block_bytes=4 * 1024 * 1024,
                    tiled_vmem_limit=32 * 1024 * 1024,
                    bf16_vpu=has_bf16_vpu)
    # v7x: 64 MiB physical VMEM, 3.2 TB/s HBM -> bigger tiles, smaller fused cap
    return dict(fused_budget=28 * 1024 * 1024,
                fused_vmem_limit=40 * 1024 * 1024,
                target_block_bytes=8 * 1024 * 1024,
                tiled_vmem_limit=48 * 1024 * 1024,
                bf16_vpu=has_bf16_vpu)


def _pad_to_2d(x_flat, n, sub):
    """Rare fallback: pad to a multiple of sub*128 and use a lane-dense slab."""
    chunk = sub * 128
    padded = pl.cdiv(n, chunk) * chunk
    pad = padded - n
    x2d = jnp.pad(x_flat, (0, pad)).reshape(_factor_2d(padded, sub))
    return x2d, pad


# --------------------------------------------------------------------------
# Kernels
# --------------------------------------------------------------------------
def _fused_kernel(x_ref, o_ref, *, inv_n, multiplier, compute_dtype):
    """Whole slab resident in VMEM: mean + threshold-mask in one shot."""
    xv = x_ref[...]
    mean = jnp.sum(xv.astype(jnp.float32)) * jnp.float32(inv_n)
    x = xv.astype(compute_dtype)
    out = jnp.where(x > mean.astype(compute_dtype),
                    x * jnp.asarray(multiplier, dtype=compute_dtype),
                    jnp.zeros((), dtype=compute_dtype))
    o_ref[...] = out.astype(o_ref.dtype)


def _sum_kernel(x_ref, out_ref, acc_ref, *, steps, steps_per, acc_rows):
    """Per-partial global sum.

    Grid = (num_partials, steps_per); axis 0 "parallel" (v7x megacore can
    shard it), axis 1 the sequential reduction.  The accumulator is a fixed
    VMEM strip (~0.5 MiB) independent of the block size: per-step work is
    pure VPU elementwise adds (hidden under the DMA), with one cross-lane
    reduce in the last step.  The tail step of an odd split is guarded.
    """
    c = pl.program_id(0)
    i = pl.program_id(1)

    @pl.when(i == 0)
    def _():
        acc_ref[...] = jnp.zeros_like(acc_ref)

    @pl.when(c * steps_per + i < steps)          # skip clamped/duplicate tail
    def _():
        block_rows = x_ref.shape[0]
        for s in range(block_rows // acc_rows):  # static, fully unrolled
            acc_ref[...] += x_ref[s * acc_rows:(s + 1) * acc_rows, :].astype(
                jnp.float32)

    @pl.when(i == steps_per - 1)
    def _():
        out_ref[...] = jnp.full(out_ref.shape, jnp.sum(acc_ref[...]),
                                dtype=out_ref.dtype)


def _mask_kernel(part_ref, x_ref, o_ref, *, inv_n, multiplier, num_partials,
                 compute_dtype):
    """out = (x > mean) * x * multiplier; mean derived in-kernel from partials."""
    total = part_ref[0, 0, 0]
    for c in range(1, num_partials):
        total = total + part_ref[c, 0, 0]
    mean = (total * jnp.float32(inv_n)).astype(compute_dtype)
    x = x_ref[...].astype(compute_dtype)
    out = jnp.where(x > mean,
                    x * jnp.asarray(multiplier, dtype=compute_dtype),
                    jnp.zeros((), dtype=compute_dtype))
    o_ref[...] = out.astype(o_ref.dtype)


# --------------------------------------------------------------------------
# Wrapper
# --------------------------------------------------------------------------
def my_dropout2(x, p=0.5, training=True):
    if not training:
        return x

    multiplier = (1.0 / (1.0 - p)) if p < 1 else 0.0
    orig_shape, orig_dtype = x.shape, x.dtype
    n = x.size
    if n == 0:
        return x

    itemsize = jnp.dtype(orig_dtype).itemsize
    sub = _sublane_multiple(orig_dtype)
    inv_n = 1.0 / n
    cfg = _chip_config()

    if orig_dtype == jnp.float32:
        compute_dtype = jnp.float32
    elif orig_dtype == jnp.bfloat16 and cfg["bf16_vpu"]:
        compute_dtype = jnp.bfloat16          # native bf16 VPU on v6e/v7x
    else:
        compute_dtype = jnp.float32

    fused_max_elems = cfg["fused_budget"] // (2 * itemsize + 4)

    fac = _factor_2d(n, sub)
    pad = 0
    if fac is None:
        x2d, pad = _pad_to_2d(x.reshape(-1), n, sub)   # rare fallback
    else:
        x2d = x.reshape(fac)                           # free bitcast reshape

    # ---------- fused single-pass path: whole tensor resident in VMEM -------
    if n <= fused_max_elems:
        out2d = pl.pallas_call(
            functools.partial(_fused_kernel, inv_n=inv_n, multiplier=multiplier,
                              compute_dtype=compute_dtype),
            out_shape=jax.ShapeDtypeStruct(x2d.shape, orig_dtype),
            in_specs=[pl.BlockSpec(memory_space=pltpu.MemorySpace.VMEM)],
            out_specs=pl.BlockSpec(memory_space=pltpu.MemorySpace.VMEM),
            compiler_params=pltpu.CompilerParams(
                vmem_limit_bytes=cfg["fused_vmem_limit"]),
        )(x2d)
        if pad:
            return out2d.reshape(-1)[:n].reshape(orig_shape)
        return out2d.reshape(orig_shape)

    # ---------- tiled two-pass path ------------------------------------------
    rows, lanes = x2d.shape
    target_elems = max(sub * lanes, cfg["target_block_bytes"] // itemsize)
    cap_rows = max(sub, (target_elems // lanes) // sub * sub)
    block_rows = _largest_divisor(rows, sub, cap_rows)
    steps = rows // block_rows

    acc_cap_rows = max(sub, ((512 * 1024) // (4 * lanes)) // sub * sub)
    acc_rows = _largest_divisor(block_rows, sub, acc_cap_rows)

    if steps >= 2:
        num_partials = 2                      # both v7x TCs, even when steps is odd
        steps_per = (steps + 1) // 2          # ceil split; tail guarded in-kernel
    else:
        num_partials = 1
        steps_per = steps

    # Pass 1: per-partial global sum (padding contributes zeros; divide by true n).
    partials = pl.pallas_call(
        functools.partial(_sum_kernel, steps=steps, steps_per=steps_per,
                          acc_rows=acc_rows),
        out_shape=jax.ShapeDtypeStruct((num_partials, 8, 128), jnp.float32),
        grid_spec=pltpu.PrefetchScalarGridSpec(
            num_scalar_prefetch=0,
            grid=(num_partials, steps_per),
            in_specs=[pl.BlockSpec(
                (block_rows, lanes),
                lambda c, i, sp=steps_per, st=steps:
                    (jnp.minimum(c * sp + i, st - 1), 0))],
            out_specs=pl.BlockSpec((1, 8, 128), lambda c, i: (c, 0, 0)),
            scratch_shapes=[pltpu.VMEM((acc_rows, lanes), jnp.float32)]),
        compiler_params=pltpu.CompilerParams(
            dimension_semantics=("parallel", "arbitrary"),
            vmem_limit_bytes=cfg["tiled_vmem_limit"]),
    )(x2d)

    # Pass 2: threshold-mask + scale.  The mean is computed inside the kernel
    # from the partials (no host-side XLA glue between the two passes).
    out2d = pl.pallas_call(
        functools.partial(_mask_kernel, inv_n=inv_n, multiplier=multiplier,
                          num_partials=num_partials, compute_dtype=compute_dtype),
        out_shape=jax.ShapeDtypeStruct(x2d.shape, orig_dtype),
        grid_spec=pltpu.PrefetchScalarGridSpec(
            num_scalar_prefetch=0,
            grid=(steps,),
            in_specs=[
                pl.BlockSpec((num_partials, 8, 128), lambda i: (0, 0, 0)),
                pl.BlockSpec((block_rows, lanes), lambda i: (i, 0)),
            ],
            out_specs=pl.BlockSpec((block_rows, lanes), lambda i: (i, 0))),
        compiler_params=pltpu.CompilerParams(
            dimension_semantics=("parallel",),
            vmem_limit_bytes=cfg["tiled_vmem_limit"]),
    )(partials, x2d)

    if pad:
        return out2d.reshape(-1)[:n].reshape(orig_shape)
    return out2d.reshape(orig_shape)


def _reference(x, p=0.5):
    multiplier = (1.0 / (1.0 - p)) if p < 1 else 0.0
    mean = jnp.mean(x)
    return (x > mean).astype(x.dtype) * x * multiplier


if __name__ == "__main__":
    key = jax.random.PRNGKey(0)
    # NCHW activation, as the conv-net context implies (small fused-path test).
    x = jax.random.normal(key, (2, 4, 16, 16), dtype=jnp.float32)

    out = jax.block_until_ready(my_dropout2(x, p=0.5, training=True))
    ref = _reference(x, p=0.5)
    assert out.shape == x.shape and out.dtype == x.dtype
    assert jnp.allclose(out, ref, atol=1e-5, rtol=1e-5), "mismatch vs reference"

    # Eval mode is identity.
    out_eval = jax.block_until_ready(my_dropout2(x, p=0.5, training=False))
    assert jnp.array_equal(out_eval, x)

    # Mid-size activation (4 MiB) -> now handled by the fused single-pass path.
    # Values are kept far from the mean so thresholding is robust to summation order.
    bits = jax.random.bernoulli(jax.random.PRNGKey(1), 0.3, (8, 16, 128, 64))
    x_mid = jnp.where(bits, 2.0, -1.0).astype(jnp.float32)
    out_mid = jax.block_until_ready(my_dropout2(x_mid, p=0.5, training=True))
    assert jnp.allclose(out_mid, _reference(x_mid, p=0.5), atol=1e-4, rtol=1e-4), \
        "fused mid-size path mismatch"

    # Large activation (32 MiB) -> tiled two-pass path.
    bits_big = jax.random.bernoulli(jax.random.PRNGKey(2), 0.3, (8, 64, 128, 128))
    x_big = jnp.where(bits_big, 2.0, -1.0).astype(jnp.float32)
    out_big = jax.block_until_ready(my_dropout2(x_big, p=0.5, training=True))
    assert jnp.allclose(out_big, _reference(x_big, p=0.5), atol=1e-4, rtol=1e-4), \
        "tiled path mismatch"

    print("KERNEL_OK")
</pallas_src>

<mosaic_0001>
module attributes {stable_mosaic.version = 11 : i64} {
  func.func @_fused_kernel(%arg0: memref<8x256xf32, #tpu.memory_space<vmem>>, %arg1: memref<8x256xf32, #tpu.memory_space<vmem>>) attributes {dimension_semantics = [], scalar_prefetch = 0 : i64, scratch_operands = 0 : i64, tpu.core_type = #tpu.core_type<tc>} {
    %c0 = arith.constant 0 : index
    %c0_0 = arith.constant 0 : index
    %0 = vector.load %arg0[%c0, %c0_0] : memref<8x256xf32, #tpu.memory_space<vmem>>, vector<8x256xf32>
    %1 = vector.shape_cast %0 : vector<8x256xf32> to vector<1x8x256xf32>
    %cst = arith.constant dense<0.000000e+00> : vector<1xf32>
    %2 = vector.multi_reduction <add>, %1, %cst [1, 2] : vector<1x8x256xf32> to vector<1xf32>
    %3 = vector.shape_cast %2 : vector<1xf32> to vector<1x1x1xf32>
    %4 = vector.extract %3[0, 0, 0] : f32 from vector<1x1x1xf32>
    %cst_1 = arith.constant 4.8828125E-4 : f32
    %5 = arith.mulf %4, %cst_1 : f32
    %6 = vector.broadcast %5 : f32 to vector<8x256xf32>
    %7 = arith.cmpf ogt, %0, %6 : vector<8x256xf32>
    %cst_2 = arith.constant 2.000000e+00 : f32
    %8 = vector.broadcast %cst_2 : f32 to vector<8x256xf32>
    %9 = arith.mulf %0, %8 : vector<8x256xf32>
    %cst_3 = arith.constant 0.000000e+00 : f32
    %10 = vector.broadcast %cst_3 : f32 to vector<8x256xf32>
    %11 = arith.select %7, %9, %10 : vector<8x256xi1>, vector<8x256xf32>
    %c0_4 = arith.constant 0 : index
    %c0_5 = arith.constant 0 : index
    %12 = vector.load %arg1[%c0_4, %c0_5] : memref<8x256xf32, #tpu.memory_space<vmem>>, vector<8x256xf32>
    tpu.vector_store %arg1[%c0_4, %c0_5], %11 {strides = array<i32>} : memref<8x256xf32, #tpu.memory_space<vmem>>, vector<8x256xf32>,
    return
  }
}

</mosaic_0001>

<llo_original>
// kernel: tpu_custom_call.1
$region0: #{tpu_custom_call.1}
  #allocation0 [shape = 'u32[]', space=smem, size = 0x4, offset = 0x4, fixed_abs, tag = 'smem constant byte address 0x4 - core index']
  #allocation1 [shape = 'u32[144,128]{1,0:T(1,128)}', space=vmem, size = 0x12000, scoped, tag = 'internal scratch']
  %s0 = inlined_call_operand.hbm [shape: f32[8,256], index: 0, kind: input, shape index: {}]
  %s1 = inlined_call_operand.hbm [shape: f32[8,256], index: 1, kind: output, shape index: {}]
  %s2 = sld [smem:[#allocation0]]
  $region18: #{tpu_custom_call.1} parent=0
    _
  %s4 = ssub.s32 1, %s2
  %s5 = scalar_select 0, %s4, %s2
  $region1: #{tpu_custom_call.1} parent=0
    #allocation2 [shape = 'u8[8192]{0}', space=vmem, size = 0x2000, scoped, tag = 'input window, operand 0, single buffered']
    #allocation3 [shape = 's32[1]{0}', space=sflag, size = 0x4, scoped, tag = 'scoped memory for tpu_custom_call.1']
    #allocation4 [shape = 's32[1]{0}', space=sflag, size = 0x4, scoped, tag = 'scoped memory for tpu_custom_call.1']
    #allocation5 [shape = 'u8[8192]{0}', space=vmem, size = 0x2000, scoped, tag = 'output window, operand 0, single buffered']
    %6 = vsyncpa [#allocation3], 0
    %7 = vsyncpa [#allocation4], 0
    // Predicated region
    $region2: #{tpu_custom_call.1} parent=1 // pred_check
      _
    $region3: #{tpu_custom_call.1} parent=1 // pred_check_branch
      %9 = sbr.rel (0) target = $region5
    $region4: #{tpu_custom_call.1} parent=1 // pred_region
      %s11 = ssub.s32 256, 256
      %12 = vsyncadd [#allocation3], %s11
      %s14 = sshll.u32 [#allocation2], 4
      %s15 = int_to_ptr.vmem [resolvable:$true] %s14
      %17 = dma.hbm_to_vmem [thread:$0]  %s0, 256, %s15, [#allocation3]
    $region5: #{tpu_custom_call.1} parent=1 // pred_fallthru
      _
    // Predicated region
    $region6: #{tpu_custom_call.1} parent=1 // pred_check
      _
    $region7: #{tpu_custom_call.1} parent=1 // pred_check_branch
      %19 = sbr.rel (0) target = $region9
    $region8: #{tpu_custom_call.1} parent=1 // pred_region
      %20 = dma.done [#allocation3], 256
    $region9: #{tpu_custom_call.1} parent=1 // pred_fallthru
      _
    %v21 = vld [vmem:[#allocation2] sm:$0xff]
    %v22 = vld [vmem:[#allocation2 + $0x8] sm:$0xff]
    %v23 = vadd.f32 %v21, %v22
    %24 = vadd.xlane.f32.xlu0 %v23
    %v25 = vpop.xlane.xlu0 %24
    %v26 = vrot.slane %v25, 4
    %v27 = vadd.f32 %v25, %v26
    %v28 = vrot.slane %v27, 2
    %v29 = vadd.f32 %v27, %v28
    %v30 = vrot.slane %v29, 1
    %v31 = vadd.f32 %v29, %v30
    %s32 = vtos %v31
    %s33 = smul.f32 %s32, 0.00048828125
    %v34 = vstv %s33
    %vm35 = vcmp.gt.f32.partialorder %v21, %v34
    %vm36 = vcmp.gt.f32.partialorder %v22, %v34
    %v37 = vmul.f32 %v21, 2.0
    %v38 = vmul.f32 %v22, 2.0
    %v39 = vsel %vm35, %v37, 0.0
    %v40 = vsel %vm36, %v38, 0.0
    %41 = vst [vmem:[#allocation5] sm:$0xff] %v39
    %42 = vst [vmem:[#allocation5 + $0x8] sm:$0xff] %v40
    // Predicated region
    $region10: #{tpu_custom_call.1} parent=1 // pred_check
      _
    $region11: #{tpu_custom_call.1} parent=1 // pred_check_branch
      %44 = sbr.rel (0) target = $region13
    $region12: #{tpu_custom_call.1} parent=1 // pred_region
      %s46 = ssub.s32 256, 256
      %47 = vsyncadd [#allocation4], %s46
      %s49 = sshll.u32 [#allocation5], 4
      %s50 = int_to_ptr.vmem [resolvable:$true] %s49
      %52 = dma.vmem_to_hbm [thread:$0]  %s50, 256, %s1, [#allocation4]
    $region13: #{tpu_custom_call.1} parent=1 // pred_fallthru
      _
    // Predicated region
    $region14: #{tpu_custom_call.1} parent=1 // pred_check
      _
    $region15: #{tpu_custom_call.1} parent=1 // pred_check_branch
      %54 = sbr.rel (0) target = $region17
    $region16: #{tpu_custom_call.1} parent=1 // pred_region
      %55 = dma.done [#allocation4], 256
    $region17: #{tpu_custom_call.1} parent=1 // pred_fallthru
      _
    %56 = vsyncpa [#allocation3], 1
    %57 = vsyncpa [#allocation4], 1

</llo_original>
